<compile_context>
chip_gen: v7x
topology: tpu7x:2x2x1
jax: 0.10.0
libtpu: 0.0.40
codegen_flags: <defaults>
</compile_context>

<pallas_src>
import math
import functools

import jax
import jax.numpy as jnp
from jax.experimental import pallas as pl
from jax.experimental.pallas import tpu as pltpu


# ----------------------------------------------------------------------------
# helpers
# ----------------------------------------------------------------------------
def _round_up(x, m):
    return ((x + m - 1) // m) * m


def _pad2d(x, rows, cols):
    r, c = x.shape
    if r == rows and c == cols:
        return x
    return jnp.pad(x, ((0, rows - r), (0, cols - c)))


def _choose_tm(m, *, max_tm=512, sub=16, min_grid=2):
    """Row tile: as big as possible (mem-bound -> bigger tiles ~ roofline),
    but when there are enough rows force at least `min_grid` tiles so v7x's
    two TensorCores can split the "parallel" grid axis."""
    mp = _round_up(max(m, 1), sub)
    if mp > sub:
        tm = min(max_tm, _round_up((mp + min_grid - 1) // min_grid, sub))
    else:
        tm = sub
    return tm, _round_up(mp, tm)


# ----------------------------------------------------------------------------
# fused Pallas kernel: classifiers + clip2kv + score fusion
# ----------------------------------------------------------------------------
def _pvic_fused_kernel(q_ref, wb_ref, bb_ref, wc_ref, bc_ref,
                       cp_ref, wk_ref, bk_ref, pr_ref,
                       scores_ref, logits_ref, sim_ref, kv_ref, *, raw_lambda):
    # logits = binary_classifier(query_embeds[0])
    # sim    = clip_classifier(query_embeds[1])
    # f32 MXU matmuls: kernel is HBM-bound, so the extra MXU passes are free
    # and logits/sim keep full precision for any downstream training loss.
    logits = jnp.dot(q_ref[0], wb_ref[...],
                     preferred_element_type=jnp.float32) + bb_ref[...]
    sim = jnp.dot(q_ref[1], wc_ref[...],
                  preferred_element_type=jnp.float32) + bc_ref[...]

    # clip_pos_lin = clip2kv(clip_pos) -- same row pipeline, DMA overlaps.
    kv_ref[...] = (jnp.dot(cp_ref[...], wk_ref[...],
                           preferred_element_type=jnp.float32)
                   + bk_ref[...]).astype(kv_ref.dtype)

    # postprocessing score fusion, kept in f32 (v5e: no bf16 VPU/EUP):
    #   lg = (total_logits[0] + total_logits[-1]) / 2
    #   scores = sigmoid(lg) * prior.prod(1) ** raw_lambda   (0 where prior==0)
    lg = 0.5 * (logits + sim)
    pr = pr_ref[...]
    pr_pow = jnp.where(pr > 0.0,
                       jnp.exp(raw_lambda * jnp.log(jnp.maximum(pr, 1e-30))),
                       0.0)
    scores_ref[...] = jax.nn.sigmoid(lg) * pr_pow
    logits_ref[...] = logits.astype(logits_ref.dtype)
    sim_ref[...] = sim.astype(sim_ref.dtype)


def prepare_pvic_params(params, num_verbs):
    """Lane-pad classifier / clip2kv params ONCE (they are reused across
    calls; doing it here removes a per-call HBM pad pass)."""
    D = params["bin_w"].shape[0]
    Kc = params["clip2kv_w"].shape[0]
    Vp = _round_up(num_verbs, 128)
    Dp = _round_up(D, 128)
    return {
        "wb": _pad2d(params["bin_w"], D, Vp),
        "bb": _pad2d(params["bin_b"].reshape(1, -1), 1, Vp),
        "wc": _pad2d(params["clip_w"], D, Vp),
        "bc": _pad2d(params["clip_b"].reshape(1, -1), 1, Vp),
        "wk": _pad2d(params["clip2kv_w"], Kc, Dp),
        "bk": _pad2d(params["clip2kv_b"].reshape(1, -1), 1, Dp),
        "V": num_verbs, "D": D, "Kc": Kc, "Vp": Vp, "Dp": Dp,
    }


def pallas_pvic_fused(query_embeds, clip_pos, prior, pp, *, raw_lambda,
                      max_tm=512, logits_dtype=jnp.bfloat16):
    """One pallas_call: both classifiers + clip2kv + score fusion.

    Returns PADDED (Mp, 128) / (Mp, Dp) slabs; consumers slice lazily.
    Padded rows of logits/sim equal the bias; padded scores are exactly 0
    because the padded prior slab is 0.
    """
    two, M, D = query_embeds.shape
    assert two == 2 and D == pp["D"]
    Kc = clip_pos.shape[1]
    assert Kc == pp["Kc"]
    Vp, Dp = pp["Vp"], pp["Dp"]

    tm, Mp = _choose_tm(M, max_tm=max_tm, sub=16, min_grid=2)

    # Only row-padding of the per-call activations (no cast passes).
    qp = jnp.pad(query_embeds, ((0, 0), (0, Mp - M), (0, 0)))
    cpp = _pad2d(clip_pos, Mp, Kc)
    # Single prior-product slab: the prod fuses into the pad op.
    prp = _pad2d(prior.prod(axis=1), Mp, Vp)

    row_q = pl.BlockSpec((2, tm, D), lambda i: (0, i, 0))
    row_cp = pl.BlockSpec((tm, Kc), lambda i: (i, 0))
    row_pr = pl.BlockSpec((tm, Vp), lambda i: (i, 0))
    row_v = pl.BlockSpec((tm, Vp), lambda i: (i, 0))
    row_d = pl.BlockSpec((tm, Dp), lambda i: (i, 0))
    inv = lambda shape: pl.BlockSpec(shape, lambda i: (0, 0))   # grid-invariant

    out_shapes = (
        jax.ShapeDtypeStruct((Mp, Vp), jnp.float32),   # scores (f32)
        jax.ShapeDtypeStruct((Mp, Vp), logits_dtype),  # logits (bf16 store)
        jax.ShapeDtypeStruct((Mp, Vp), logits_dtype),  # sim    (bf16 store)
        jax.ShapeDtypeStruct((Mp, Dp), jnp.float32),   # clip2kv output
    )

    scores, logits, sim, clip_kv = pl.pallas_call(
        functools.partial(_pvic_fused_kernel, raw_lambda=raw_lambda),
        out_shape=out_shapes,
        grid_spec=pltpu.PrefetchScalarGridSpec(
            num_scalar_prefetch=0,
            grid=(Mp // tm,),
            in_specs=[row_q,
                      inv((D, Vp)), inv((1, Vp)),     # binary classifier W, b
                      inv((D, Vp)), inv((1, Vp)),     # clip classifier   W, b
                      row_cp, inv((Kc, Dp)), inv((1, Dp)),   # clip2kv
                      row_pr],
            out_specs=(row_v, row_v, row_v, row_d),
        ),
        compiler_params=pltpu.CompilerParams(
            dimension_semantics=("parallel",)),
    )(qp, pp["wb"], pp["bb"], pp["wc"], pp["bc"],
      cpp, pp["wk"], pp["bk"], prp)

    return {"scores": scores, "logits": logits, "sim": sim,
            "clip_pos_lin": clip_kv,
            "valid_rows": M, "valid_verbs": pp["V"], "valid_dim": D}


# ----------------------------------------------------------------------------
# plain-JAX pieces (not worth a kernel / glue)
# ----------------------------------------------------------------------------
def inverse_sigmoid(x, eps=1e-5):
    # (M, 4) boxes: a dedicated pallas_call was pure launch + masked-store
    # overhead; XLA fuses clip/max/log fine.
    x = jnp.clip(x, 0.0, 1.0)
    return jnp.log(jnp.maximum(x, eps) / jnp.maximum(1.0 - x, eps))


def position_embedding_sine(mask, num_pos_feats=128, temperature=20.0,
                            scale=2.0 * math.pi):
    # mask: (b, h, w) bool, True = padding.  Returns (b, h*w, 1, 2*num_pos_feats).
    not_mask = (~mask).astype(jnp.float32)
    y_embed = jnp.cumsum(not_mask, axis=1)
    x_embed = jnp.cumsum(not_mask, axis=2)
    eps = 1e-6
    y_embed = y_embed / (y_embed[:, -1:, :] + eps) * scale
    x_embed = x_embed / (x_embed[:, :, -1:] + eps) * scale
    dim_t = jnp.arange(num_pos_feats, dtype=jnp.float32)
    dim_t = temperature ** (2.0 * jnp.floor(dim_t / 2.0) / num_pos_feats)
    pos_x = x_embed[..., None] / dim_t
    pos_y = y_embed[..., None] / dim_t

    def interleave(p):
        s = jnp.sin(p[..., 0::2])
        c = jnp.cos(p[..., 1::2])
        return jnp.stack([s, c], axis=4).reshape(p.shape[0], p.shape[1],
                                                 p.shape[2], -1)

    pos = jnp.concatenate([interleave(pos_y), interleave(pos_x)], axis=3)
    b, h, w, c = pos.shape
    return pos.reshape(b, h * w, 1, c)


# ----------------------------------------------------------------------------
# PViC forward (Pallas-backed hot path)
# ----------------------------------------------------------------------------
def pvic_forward(prepared_params, query_embeds, clip_pos, prior_scores, mask,
                 raw_lambda=2.8):
    """
    prepared_params : output of prepare_pvic_params (lane-padded weights)
    query_embeds    : (2, M, repr_size)  row 0 = triplet decoder output,
                                         row 1 = clip decoder output
    clip_pos        : (M, 768)
    prior_scores    : (M, 2, num_verbs)
    mask            : (b, h, w) bool feature-map padding mask (for kv_pe)
    """
    # TODO(synk): detector / postprocessor / ho_matcher / feature_head /
    # triplet_decoder / clip_decoder are constructor-injected external modules
    # with unknown architectures; their outputs are provided as inputs here.

    # k_pos = self.kv_pe(...)  -- elementwise setup glue, not on the hot path.
    k_pos = position_embedding_sine(mask)

    # Fused: binary_classifier + clip_classifier + clip2kv + score fusion.
    out = pallas_pvic_fused(query_embeds, clip_pos, prior_scores,
                            prepared_params, raw_lambda=raw_lambda)

    # TODO(synk): data-dependent torch.nonzero gather of valid (pair, verb)
    # entries has dynamic shape; dense padded score map is returned instead
    # (padded rows/cols must be masked by the consumer: rows >= M, cols >= 24).
    out["k_pos"] = k_pos
    return out


# ----------------------------------------------------------------------------
# main
# ----------------------------------------------------------------------------
if __name__ == "__main__":
    key = jax.random.PRNGKey(0)
    ks = jax.random.split(key, 10)

    # Small, forward-consistent sizes.
    repr_size = 128          # module default is 384; kept small & tile-friendly
    num_verbs = 24
    clip_dim = 768
    n_pairs = [8, 8]         # 2 images, 8 human-object pairs each
    M = sum(n_pairs)
    b, h, w = 2, 8, 8        # feature-map mask for kv_pe

    # Deterministic parameters (synthetic, not a checkpoint).
    params = {
        "clip2kv_w": 0.02 * jax.random.normal(ks[0], (clip_dim, repr_size),
                                              jnp.float32),
        "clip2kv_b": jnp.zeros((repr_size,), jnp.float32),
        "bin_w": 0.02 * jax.random.normal(ks[1], (repr_size, num_verbs),
                                          jnp.float32),
        "bin_b": jnp.zeros((num_verbs,), jnp.float32),
        "clip_w": 0.02 * jax.random.normal(ks[2], (repr_size, num_verbs),
                                           jnp.float32),
        "clip_b": jnp.zeros((num_verbs,), jnp.float32),
    }
    # Pad/layout the params once (params are reused across forwards).
    prepared = prepare_pvic_params(params, num_verbs)

    # Synthetic stand-ins for external-module outputs.
    query_embeds = jax.random.normal(ks[3], (2, M, repr_size), jnp.float32)
    clip_pos = jax.random.normal(ks[4], (M, clip_dim), jnp.float32)
    prior = jax.random.uniform(ks[5], (M, 2, num_verbs), jnp.float32)
    # zero out some priors, mimicking invalid (pair, verb) combinations
    prior = prior * (jax.random.uniform(ks[6], (M, 1, num_verbs)) > 0.3)
    mask = jnp.zeros((b, h, w), dtype=bool).at[:, :, -2:].set(True)

    out = pvic_forward(prepared, query_embeds, clip_pos, prior, mask)

    # inverse_sigmoid on synthetic boxes (plain jnp per perf review).
    boxes = jax.random.uniform(ks[7], (M, 4), jnp.float32)
    inv_boxes = inverse_sigmoid(boxes)

    jax.block_until_ready((out["scores"], out["clip_pos_lin"], inv_boxes))

    # Consumers slice the padded slabs lazily; do it once here for checks.
    V, D = num_verbs, repr_size
    scores = out["scores"][:M, :V]
    logits = out["logits"][:M, :V].astype(jnp.float32)
    sim = out["sim"][:M, :V].astype(jnp.float32)
    clip_lin = out["clip_pos_lin"][:M, :D]

    # Sanity checks against plain-JAX references.
    ref_logits = query_embeds[0] @ params["bin_w"] + params["bin_b"]
    ref_sim = query_embeds[1] @ params["clip_w"] + params["clip_b"]
    ref_pr = prior.prod(1)
    ref_scores = jax.nn.sigmoid(0.5 * (ref_logits + ref_sim)) * \
        jnp.where(ref_pr > 0, ref_pr ** 2.8, 0.0)
    ref_clip = clip_pos @ params["clip2kv_w"] + params["clip2kv_b"]
    xb = jnp.clip(boxes, 0.0, 1.0)
    ref_inv = jnp.log(jnp.maximum(xb, 1e-5) / jnp.maximum(1.0 - xb, 1e-5))

    assert jnp.allclose(logits, ref_logits, atol=2e-2)
    assert jnp.allclose(sim, ref_sim, atol=2e-2)
    assert jnp.allclose(scores, ref_scores, atol=2e-2)
    assert jnp.allclose(clip_lin, ref_clip, atol=5e-2)
    assert jnp.allclose(inv_boxes, ref_inv, atol=1e-4)
    # padded score columns/rows must be exactly 0 (prior pad is 0)
    assert jnp.all(out["scores"][:, V:] == 0.0)

    print("KERNEL_OK")
</pallas_src>

<mosaic_0001>
module attributes {stable_mosaic.version = 11 : i64} {
  func.func @_pvic_fused_kernel(%arg0: i32, %arg1: memref<2x16x128xf32, #tpu.memory_space<vmem>>, %arg2: memref<128x128xf32, #tpu.memory_space<vmem>>, %arg3: memref<1x128xf32, #tpu.memory_space<vmem>>, %arg4: memref<128x128xf32, #tpu.memory_space<vmem>>, %arg5: memref<1x128xf32, #tpu.memory_space<vmem>>, %arg6: memref<16x768xf32, #tpu.memory_space<vmem>>, %arg7: memref<768x128xf32, #tpu.memory_space<vmem>>, %arg8: memref<1x128xf32, #tpu.memory_space<vmem>>, %arg9: memref<16x128xf32, #tpu.memory_space<vmem>>, %arg10: memref<16x128xf32, #tpu.memory_space<vmem>>, %arg11: memref<16x128xbf16, #tpu.memory_space<vmem>>, %arg12: memref<16x128xbf16, #tpu.memory_space<vmem>>, %arg13: memref<16x128xf32, #tpu.memory_space<vmem>>) attributes {dimension_semantics = [#tpu.dimension_semantics<parallel>], iteration_bounds = array<i64: 1>, scalar_prefetch = 0 : i64, scratch_operands = 0 : i64, tpu.core_type = #tpu.core_type<tc>, window_params = [{transform_indices = @transform_0, window_bounds = array<i64: 2, 16, 128>}, {pipeline_mode = #tpu.pipeline_mode<synchronous>, transform_indices = @transform_1, window_bounds = array<i64: 128, 128>}, {pipeline_mode = #tpu.pipeline_mode<synchronous>, transform_indices = @transform_2, window_bounds = array<i64: 1, 128>}, {pipeline_mode = #tpu.pipeline_mode<synchronous>, transform_indices = @transform_3, window_bounds = array<i64: 128, 128>}, {pipeline_mode = #tpu.pipeline_mode<synchronous>, transform_indices = @transform_4, window_bounds = array<i64: 1, 128>}, {transform_indices = @transform_5, window_bounds = array<i64: 16, 768>}, {pipeline_mode = #tpu.pipeline_mode<synchronous>, transform_indices = @transform_6, window_bounds = array<i64: 768, 128>}, {pipeline_mode = #tpu.pipeline_mode<synchronous>, transform_indices = @transform_7, window_bounds = array<i64: 1, 128>}, {transform_indices = @transform_8, window_bounds = array<i64: 16, 128>}, {transform_indices = @transform_9, window_bounds = array<i64: 16, 128>}, {transform_indices = @transform_10, window_bounds = array<i64: 16, 128>}, {transform_indices = @transform_11, window_bounds = array<i64: 16, 128>}, {transform_indices = @transform_12, window_bounds = array<i64: 16, 128>}]} {
    %c0 = arith.constant 0 : index
    %c0_0 = arith.constant 0 : index
    %c0_1 = arith.constant 0 : index
    %0 = vector.load %arg1[%c0, %c0_0, %c0_1] : memref<2x16x128xf32, #tpu.memory_space<vmem>>, vector<1x16x128xf32>
    %1 = vector.shape_cast %0 : vector<1x16x128xf32> to vector<16x128xf32>
    %c0_2 = arith.constant 0 : index
    %c0_3 = arith.constant 0 : index
    %2 = vector.load %arg2[%c0_2, %c0_3] : memref<128x128xf32, #tpu.memory_space<vmem>>, vector<128x128xf32>
    %cst = arith.constant dense<0.000000e+00> : vector<16x128xf32>
    %3 = tpu.matmul %1, %2, %cst {dimension_numbers = #tpu.dot_dimension_numbers<[1], [0], [0], [1], [0, 0, 1, 1], [], []>} : vector<16x128xf32>, vector<128x128xf32>, vector<16x128xf32> -> vector<16x128xf32>
    %c0_4 = arith.constant 0 : index
    %c0_5 = arith.constant 0 : index
    %4 = vector.load %arg3[%c0_4, %c0_5] : memref<1x128xf32, #tpu.memory_space<vmem>>, vector<1x128xf32>
    %5 = vector.broadcast %4 : vector<1x128xf32> to vector<16x128xf32>
    %6 = arith.addf %3, %5 : vector<16x128xf32>
    %c1 = arith.constant 1 : index
    %c0_6 = arith.constant 0 : index
    %c0_7 = arith.constant 0 : index
    %7 = vector.load %arg1[%c1, %c0_6, %c0_7] : memref<2x16x128xf32, #tpu.memory_space<vmem>>, vector<1x16x128xf32>
    %8 = vector.shape_cast %7 : vector<1x16x128xf32> to vector<16x128xf32>
    %c0_8 = arith.constant 0 : index
    %c0_9 = arith.constant 0 : index
    %9 = vector.load %arg4[%c0_8, %c0_9] : memref<128x128xf32, #tpu.memory_space<vmem>>, vector<128x128xf32>
    %cst_10 = arith.constant dense<0.000000e+00> : vector<16x128xf32>
    %10 = tpu.matmul %8, %9, %cst_10 {dimension_numbers = #tpu.dot_dimension_numbers<[1], [0], [0], [1], [0, 0, 1, 1], [], []>} : vector<16x128xf32>, vector<128x128xf32>, vector<16x128xf32> -> vector<16x128xf32>
    %c0_11 = arith.constant 0 : index
    %c0_12 = arith.constant 0 : index
    %11 = vector.load %arg5[%c0_11, %c0_12] : memref<1x128xf32, #tpu.memory_space<vmem>>, vector<1x128xf32>
    %12 = vector.broadcast %11 : vector<1x128xf32> to vector<16x128xf32>
    %13 = arith.addf %10, %12 : vector<16x128xf32>
    %c0_13 = arith.constant 0 : index
    %c0_14 = arith.constant 0 : index
    %14 = vector.load %arg6[%c0_13, %c0_14] : memref<16x768xf32, #tpu.memory_space<vmem>>, vector<16x768xf32>
    %c0_15 = arith.constant 0 : index
    %c0_16 = arith.constant 0 : index
    %15 = vector.load %arg7[%c0_15, %c0_16] : memref<768x128xf32, #tpu.memory_space<vmem>>, vector<768x128xf32>
    %cst_17 = arith.constant dense<0.000000e+00> : vector<16x128xf32>
    %16 = tpu.matmul %14, %15, %cst_17 {dimension_numbers = #tpu.dot_dimension_numbers<[1], [0], [0], [1], [0, 0, 1, 1], [], []>} : vector<16x768xf32>, vector<768x128xf32>, vector<16x128xf32> -> vector<16x128xf32>
    %c0_18 = arith.constant 0 : index
    %c0_19 = arith.constant 0 : index
    %17 = vector.load %arg8[%c0_18, %c0_19] : memref<1x128xf32, #tpu.memory_space<vmem>>, vector<1x128xf32>
    %18 = vector.broadcast %17 : vector<1x128xf32> to vector<16x128xf32>
    %19 = arith.addf %16, %18 : vector<16x128xf32>
    %c0_20 = arith.constant 0 : index
    %c0_21 = arith.constant 0 : index
    %20 = vector.load %arg13[%c0_20, %c0_21] : memref<16x128xf32, #tpu.memory_space<vmem>>, vector<16x128xf32>
    tpu.vector_store %arg13[%c0_20, %c0_21], %19 {strides = array<i32>} : memref<16x128xf32, #tpu.memory_space<vmem>>, vector<16x128xf32>,
    %21 = arith.addf %6, %13 : vector<16x128xf32>
    %cst_22 = arith.constant 5.000000e-01 : f32
    %22 = vector.broadcast %cst_22 : f32 to vector<16x128xf32>
    %23 = arith.mulf %22, %21 : vector<16x128xf32>
    %c0_23 = arith.constant 0 : index
    %c0_24 = arith.constant 0 : index
    %24 = vector.load %arg9[%c0_23, %c0_24] : memref<16x128xf32, #tpu.memory_space<vmem>>, vector<16x128xf32>
    %cst_25 = arith.constant 0.000000e+00 : f32
    %25 = vector.broadcast %cst_25 : f32 to vector<16x128xf32>
    %26 = arith.cmpf ogt, %24, %25 : vector<16x128xf32>
    %cst_26 = arith.constant 1.000000e-30 : f32
    %27 = vector.broadcast %cst_26 : f32 to vector<16x128xf32>
    %28 = arith.maximumf %24, %27 : vector<16x128xf32>
    %29 = math.log %28 : vector<16x128xf32>
    %cst_27 = arith.constant 2.800000e+00 : f32
    %30 = vector.broadcast %cst_27 : f32 to vector<16x128xf32>
    %31 = arith.mulf %30, %29 : vector<16x128xf32>
    %32 = math.exp %31 : vector<16x128xf32>
    %cst_28 = arith.constant 0.000000e+00 : f32
    %33 = vector.broadcast %cst_28 : f32 to vector<16x128xf32>
    %34 = arith.select %26, %32, %33 : vector<16x128xi1>, vector<16x128xf32>
    %35 = arith.negf %23 : vector<16x128xf32>
    %36 = math.exp %35 : vector<16x128xf32>
    %cst_29 = arith.constant 1.000000e+00 : f32
    %37 = vector.broadcast %cst_29 : f32 to vector<16x128xf32>
    %38 = arith.addf %37, %36 : vector<16x128xf32>
    %39 = arith.divf %37, %38 : vector<16x128xf32>
    %40 = arith.mulf %39, %34 : vector<16x128xf32>
    %c0_30 = arith.constant 0 : index
    %c0_31 = arith.constant 0 : index
    %41 = vector.load %arg10[%c0_30, %c0_31] : memref<16x128xf32, #tpu.memory_space<vmem>>, vector<16x128xf32>
    tpu.vector_store %arg10[%c0_30, %c0_31], %40 {strides = array<i32>} : memref<16x128xf32, #tpu.memory_space<vmem>>, vector<16x128xf32>,
    %42 = arith.truncf %6 : vector<16x128xf32> to vector<16x128xbf16>
    %c0_32 = arith.constant 0 : index
    %c0_33 = arith.constant 0 : index
    %43 = vector.load %arg11[%c0_32, %c0_33] : memref<16x128xbf16, #tpu.memory_space<vmem>>, vector<16x128xbf16>
    tpu.vector_store %arg11[%c0_32, %c0_33], %42 {strides = array<i32>} : memref<16x128xbf16, #tpu.memory_space<vmem>>, vector<16x128xbf16>,
    %44 = arith.truncf %13 : vector<16x128xf32> to vector<16x128xbf16>
    %c0_34 = arith.constant 0 : index
    %c0_35 = arith.constant 0 : index
    %45 = vector.load %arg12[%c0_34, %c0_35] : memref<16x128xbf16, #tpu.memory_space<vmem>>, vector<16x128xbf16>
    tpu.vector_store %arg12[%c0_34, %c0_35], %44 {strides = array<i32>} : memref<16x128xbf16, #tpu.memory_space<vmem>>, vector<16x128xbf16>,
    return
  }
  func.func @transform_0(%arg0: i32) -> (i32, i32, i32) {
    %c0_i32 = arith.constant 0 : i32
    %c0_i32_0 = arith.constant 0 : i32
    %c0_i32_1 = arith.constant 0 : i32
    return %c0_i32, %arg0, %c0_i32_0 : i32, i32, i32
  }
  func.func @transform_1(%arg0: i32) -> (i32, i32) {
    %c0_i32 = arith.constant 0 : i32
    %c0_i32_0 = arith.constant 0 : i32
    %c0_i32_1 = arith.constant 0 : i32
    return %c0_i32, %c0_i32_0 : i32, i32
  }
  func.func @transform_2(%arg0: i32) -> (i32, i32) {
    %c0_i32 = arith.constant 0 : i32
    %c0_i32_0 = arith.constant 0 : i32
    %c0_i32_1 = arith.constant 0 : i32
    return %c0_i32, %c0_i32_0 : i32, i32
  }
  func.func @transform_3(%arg0: i32) -> (i32, i32) {
    %c0_i32 = arith.constant 0 : i32
    %c0_i32_0 = arith.constant 0 : i32
    %c0_i32_1 = arith.constant 0 : i32
    return %c0_i32, %c0_i32_0 : i32, i32
  }
  func.func @transform_4(%arg0: i32) -> (i32, i32) {
    %c0_i32 = arith.constant 0 : i32
    %c0_i32_0 = arith.constant 0 : i32
    %c0_i32_1 = arith.constant 0 : i32
    return %c0_i32, %c0_i32_0 : i32, i32
  }
  func.func @transform_5(%arg0: i32) -> (i32, i32) {
    %c0_i32 = arith.constant 0 : i32
    %c0_i32_0 = arith.constant 0 : i32
    return %arg0, %c0_i32 : i32, i32
  }
  func.func @transform_6(%arg0: i32) -> (i32, i32) {
    %c0_i32 = arith.constant 0 : i32
    %c0_i32_0 = arith.constant 0 : i32
    %c0_i32_1 = arith.constant 0 : i32
    return %c0_i32, %c0_i32_0 : i32, i32
  }
  func.func @transform_7(%arg0: i32) -> (i32, i32) {
    %c0_i32 = arith.constant 0 : i32
    %c0_i32_0 = arith.constant 0 : i32
    %c0_i32_1 = arith.constant 0 : i32
    return %c0_i32, %c0_i32_0 : i32, i32
  }
  func.func @transform_8(%arg0: i32) -> (i32, i32) {
    %c0_i32 = arith.constant 0 : i32
    %c0_i32_0 = arith.constant 0 : i32
    return %arg0, %c0_i32 : i32, i32
  }
  func.func @transform_9(%arg0: i32) -> (i32, i32) {
    %c0_i32 = arith.constant 0 : i32
    %c0_i32_0 = arith.constant 0 : i32
    return %arg0, %c0_i32 : i32, i32
  }
  func.func @transform_10(%arg0: i32) -> (i32, i32) {
    %c0_i32 = arith.constant 0 : i32
    %c0_i32_0 = arith.constant 0 : i32
    return %arg0, %c0_i32 : i32, i32
  }
  func.func @transform_11(%arg0: i32) -> (i32, i32) {
    %c0_i32 = arith.constant 0 : i32
    %c0_i32_0 = arith.constant 0 : i32
    return %arg0, %c0_i32 : i32, i32
  }
  func.func @transform_12(%arg0: i32) -> (i32, i32) {
    %c0_i32 = arith.constant 0 : i32
    %c0_i32_0 = arith.constant 0 : i32
    return %arg0, %c0_i32 : i32, i32
  }
}

</mosaic_0001>

<llo_original>
// kernel: tpu_custom_call.1
$region0: #{tpu_custom_call.1}
  #allocation0 [shape = 'u32[]', space=smem, size = 0x4, offset = 0x4, fixed_abs, tag = 'smem constant byte address 0x4 - core index']
  #allocation1 [shape = 'u32[144,128]{1,0:T(1,128)}', space=vmem, size = 0x12000, scoped, tag = 'internal scratch']
  %s0 = inlined_call_operand.hbm [shape: f32[2,16,128], index: 0, kind: input, shape index: {}]
  %s1 = inlined_call_operand.hbm [shape: f32[128,128], index: 1, kind: input, shape index: {}]
  %s2 = inlined_call_operand.vmem [shape: f32[1,128], index: 2, kind: input, shape index: {}]
  %s3 = inlined_call_operand.hbm [shape: f32[128,128], index: 3, kind: input, shape index: {}]
  %s4 = inlined_call_operand.vmem [shape: f32[1,128], index: 4, kind: input, shape index: {}]
  %s5 = inlined_call_operand.hbm [shape: f32[16,768], index: 5, kind: input, shape index: {}]
  %s6 = inlined_call_operand.hbm [shape: f32[768,128], index: 6, kind: input, shape index: {}]
  %s7 = inlined_call_operand.vmem [shape: f32[1,128], index: 7, kind: input, shape index: {}]
  %s8 = inlined_call_operand.vmem [shape: f32[16,128], index: 8, kind: input, shape index: {}]
  %s9 = inlined_call_operand.hbm [shape: f32[16,128], index: 9, kind: output, shape index: {0}]
  %s10 = inlined_call_operand.hbm [shape: bf16[16,128], index: 10, kind: output, shape index: {1}]
  %s11 = inlined_call_operand.hbm [shape: bf16[16,128], index: 11, kind: output, shape index: {2}]
  %s12 = inlined_call_operand.hbm [shape: f32[16,128], index: 12, kind: output, shape index: {3}]
  %13 = xla_tuple %s9, %s10, %s11, %s12
  %s14 = sld [smem:[#allocation0]]
  $region90: #{tpu_custom_call.1} parent=0
    _
  %s16 = ssub.s32 1, %s14
  %s17 = scalar_select 0, %s16, %s14
  $region1: #{tpu_custom_call.1} parent=0
    #allocation2 [shape = 'u8[16384]{0}', space=vmem, size = 0x4000, scoped, tag = 'input window, operand 0, single buffered']
    #allocation3 [shape = 's32[1]{0}', space=sflag, size = 0x4, scoped, tag = 'scoped memory for tpu_custom_call.1']
    #allocation4 [shape = 's32[1]{0}', space=sflag, size = 0x4, scoped, tag = 'scoped memory for tpu_custom_call.1']
    #allocation5 [shape = 'u8[65536]{0}', space=vmem, size = 0x10000, scoped, tag = 'input window, operand 1, single buffered']
    #allocation6 [shape = 's32[1]{0}', space=sflag, size = 0x4, scoped, tag = 'scoped memory for tpu_custom_call.1']
    #allocation7 [shape = 'u8[65536]{0}', space=vmem, size = 0x10000, scoped, tag = 'input window, operand 3, single buffered']
    #allocation8 [shape = 'u8[49152]{0}', space=vmem, size = 0xc000, scoped, tag = 'input window, operand 5, single buffered']
    #allocation9 [shape = 's32[1]{0}', space=sflag, size = 0x4, scoped, tag = 'scoped memory for tpu_custom_call.1']
    #allocation10 [shape = 'u8[393216]{0}', space=vmem, size = 0x60000, scoped, tag = 'input window, operand 6, single buffered']
    #allocation11 [shape = 'u8[8192]{0}', space=vmem, size = 0x2000, scoped, tag = 'output window, operand 0, single buffered']
    #allocation12 [shape = 'u8[4096]{0}', space=vmem, size = 0x1000, scoped, tag = 'output window, operand 1, single buffered']
    #allocation13 [shape = 's32[1]{0}', space=sflag, size = 0x4, scoped, tag = 'scoped memory for tpu_custom_call.1']
    #allocation14 [shape = 'u8[4096]{0}', space=vmem, size = 0x1000, scoped, tag = 'output window, operand 2, single buffered']
    #allocation15 [shape = 'u8[8192]{0}', space=vmem, size = 0x2000, scoped, tag = 'output window, operand 3, single buffered']
    #allocation16 [shape = 's32[1]{0}', space=sflag, size = 0x4, scoped, tag = 'scoped memory for tpu_custom_call.1']
    %18 = vsyncpa [#allocation3], 0
    %19 = vsyncpa [#allocation6], 0
    %20 = vsyncpa [#allocation9], 0
    %21 = vsyncpa [#allocation4], 0
    %22 = vsyncpa [#allocation13], 0
    %23 = vsyncpa [#allocation16], 0
    // Predicated region
    $region2: #{tpu_custom_call.1} parent=1 // pred_check
      _
    $region3: #{tpu_custom_call.1} parent=1 // pred_check_branch
      %25 = sbr.rel (0) target = $region5
    $region4: #{tpu_custom_call.1} parent=1 // pred_region
      %s27 = ssub.s32 512, 512
      %28 = vsyncadd [#allocation3], %s27
      %s29 = sshll.u32 [#allocation2], 4
      %s30 = int_to_ptr.vmem [resolvable:$true] %s29
      %35 = dma.hbm_to_vmem [thread:$0]  %s0, 512, %s30, [#allocation3], 128, 128, 8
    $region5: #{tpu_custom_call.1} parent=1 // pred_fallthru
      _
    // Predicated region
    $region6: #{tpu_custom_call.1} parent=1 // pred_check
      _
    $region7: #{tpu_custom_call.1} parent=1 // pred_check_branch
      %37 = sbr.rel (0) target = $region9
    $region8: #{tpu_custom_call.1} parent=1 // pred_region
      %s39 = ssub.s32 2048, 2048
      %40 = vsyncadd [#allocation6], %s39
      %s41 = sshll.u32 [#allocation5], 4
      %s42 = int_to_ptr.vmem [resolvable:$true] %s41
      %47 = dma.hbm_to_vmem [thread:$0]  %s1, 2048, %s42, [#allocation6], 128, 128, 8
    $region9: #{tpu_custom_call.1} parent=1 // pred_fallthru
      _
    // Predicated region
    $region10: #{tpu_custom_call.1} parent=1 // pred_check
      _
    $region11: #{tpu_custom_call.1} parent=1 // pred_check_branch
      %49 = sbr.rel (0) target = $region13
    $region12: #{tpu_custom_call.1} parent=1 // pred_region
      _
    $region13: #{tpu_custom_call.1} parent=1 // pred_fallthru
      _
    // Predicated region
    $region14: #{tpu_custom_call.1} parent=1 // pred_check
      _
    $region15: #{tpu_custom_call.1} parent=1 // pred_check_branch
      %51 = sbr.rel (0) target = $region17
    $region16: #{tpu_custom_call.1} parent=1 // pred_region
      %s53 = ssub.s32 2048, 2048
      %54 = vsyncadd [#allocation6], %s53
      %s55 = sshll.u32 [#allocation7], 4
      %s56 = int_to_ptr.vmem [resolvable:$true] %s55
      %61 = dma.hbm_to_vmem [thread:$0]  %s3, 2048, %s56, [#allocation6], 128, 128, 8
    $region17: #{tpu_custom_call.1} parent=1 // pred_fallthru
      _
    // Predicated region
    $region18: #{tpu_custom_call.1} parent=1 // pred_check
      _
    $region19: #{tpu_custom_call.1} parent=1 // pred_check_branch
      %63 = sbr.rel (0) target = $region21
    $region20: #{tpu_custom_call.1} parent=1 // pred_region
      _
    $region21: #{tpu_custom_call.1} parent=1 // pred_fallthru
      _
    // Predicated region
    $region22: #{tpu_custom_call.1} parent=1 // pred_check
      _
    $region23: #{tpu_custom_call.1} parent=1 // pred_check_branch
      %65 = sbr.rel (0) target = $region25
    $region24: #{tpu_custom_call.1} parent=1 // pred_region
      %s67 = ssub.s32 1536, 1536
      %68 = vsyncadd [#allocation9], %s67
      %s69 = sshll.u32 [#allocation8], 4
      %s70 = int_to_ptr.vmem [resolvable:$true] %s69
      %75 = dma.hbm_to_vmem [thread:$0]  %s5, 1536, %s70, [#allocation9], 768, 768, 48
    $region25: #{tpu_custom_call.1} parent=1 // pred_fallthru
      _
    // Predicated region
    $region26: #{tpu_custom_call.1} parent=1 // pred_check
      _
    $region27: #{tpu_custom_call.1} parent=1 // pred_check_branch
      %77 = sbr.rel (0) target = $region29
    $region28: #{tpu_custom_call.1} parent=1 // pred_region
      %s79 = ssub.s32 12288, 12288
      %80 = vsyncadd [#allocation9], %s79
      %s81 = sshll.u32 [#allocation10], 4
      %s82 = int_to_ptr.vmem [resolvable:$true] %s81
      %87 = dma.hbm_to_vmem [thread:$0]  %s6, 12288, %s82, [#allocation9], 128, 128, 8
    $region29: #{tpu_custom_call.1} parent=1 // pred_fallthru
      _
    // Predicated region
    $region30: #{tpu_custom_call.1} parent=1 // pred_check
      _
    $region31: #{tpu_custom_call.1} parent=1 // pred_check_branch
      %89 = sbr.rel (0) target = $region33
    $region32: #{tpu_custom_call.1} parent=1 // pred_region
      _
    $region33: #{tpu_custom_call.1} parent=1 // pred_fallthru
      _
    // Predicated region
    $region34: #{tpu_custom_call.1} parent=1 // pred_check
      _
    $region35: #{tpu_custom_call.1} parent=1 // pred_check_branch
      %91 = sbr.rel (0) target = $region37
    $region36: #{tpu_custom_call.1} parent=1 // pred_region
      _
    $region37: #{tpu_custom_call.1} parent=1 // pred_fallthru
      _
    // Predicated region
    $region38: #{tpu_custom_call.1} parent=1 // pred_check
      _
    $region39: #{tpu_custom_call.1} parent=1 // pred_check_branch
      %93 = sbr.rel (0) target = $region41
    $region40: #{tpu_custom_call.1} parent=1 // pred_region
      %94 = dma.done [#allocation3], 512
    $region41: #{tpu_custom_call.1} parent=1 // pred_fallthru
      _
    // Predicated region
    $region42: #{tpu_custom_call.1} parent=1 // pred_check
      _
    $region43: #{tpu_custom_call.1} parent=1 // pred_check_branch
      %96 = sbr.rel (0) target = $region45
    $region44: #{tpu_custom_call.1} parent=1 // pred_region
      %97 = dma.done [#allocation6], 2048
    $region45: #{tpu_custom_call.1} parent=1 // pred_fallthru
      _
    // Predicated region
    $region46: #{tpu_custom_call.1} parent=1 // pred_check
      _
    $region47: #{tpu_custom_call.1} parent=1 // pred_check_branch
      %99 = sbr.rel (0) target = $region49
    $region48: #{tpu_custom_call.1} parent=1 // pred_region
      %100 = dma.done [#allocation6], 2048
    $region49: #{tpu_custom_call.1} parent=1 // pred_fallthru
      _
    // Predicated region
    $region50: #{tpu_custom_call.1} parent=1 // pred_check
      _
    $region51: #{tpu_custom_call.1} parent=1 // pred_check_branch
      %102 = sbr.rel (0) target = $region53
    $region52: #{tpu_custom_call.1} parent=1 // pred_region
      %103 = dma.done [#allocation9], 1536
    $region53: #{tpu_custom_call.1} parent=1 // pred_fallthru
      _
    // Predicated region
    $region54: #{tpu_custom_call.1} parent=1 // pred_check
      _
    $region55: #{tpu_custom_call.1} parent=1 // pred_check_branch
      %105 = sbr.rel (0) target = $region57
    $region56: #{tpu_custom_call.1} parent=1 // pred_region
      %106 = dma.done [#allocation9], 12288
    $region57: #{tpu_custom_call.1} parent=1 // pred_fallthru
      _
    %v107 = vld [vmem:[#allocation2] sm:$0xff]
    %v108 = vld [vmem:[#allocation2 + $0x8] sm:$0xff]
    %v109 = vld [vmem:[#allocation5] sm:$0xff]
    %v110 = vld [vmem:[#allocation5 + $0x8] sm:$0xff]
    %v111 = vld [vmem:[#allocation5 + $0x10] sm:$0xff]
    %v112 = vld [vmem:[#allocation5 + $0x18] sm:$0xff]
    %v113 = vld [vmem:[#allocation5 + $0x20] sm:$0xff]
    %v114 = vld [vmem:[#allocation5 + $0x28] sm:$0xff]
    %v115 = vld [vmem:[#allocation5 + $0x30] sm:$0xff]
    %v116 = vld [vmem:[#allocation5 + $0x38] sm:$0xff]
    %v117 = vld [vmem:[#allocation5 + $0x40] sm:$0xff]
    %v118 = vld [vmem:[#allocation5 + $0x48] sm:$0xff]
    %v119 = vld [vmem:[#allocation5 + $0x50] sm:$0xff]
    %v120 = vld [vmem:[#allocation5 + $0x58] sm:$0xff]
    %v121 = vld [vmem:[#allocation5 + $0x60] sm:$0xff]
    %v122 = vld [vmem:[#allocation5 + $0x68] sm:$0xff]
    %v123 = vld [vmem:[#allocation5 + $0x70] sm:$0xff]
    %v124 = vld [vmem:[#allocation5 + $0x78] sm:$0xff]
    %v125 = vld [vmem:[%s2] sm:$0x1]
    %v127 = vlaneseq
    %v128 = vshrl.u32 %v127, 7
    %v129 = vsub.s32 0, %v128
    %v130 = vrot.slane %v125, %v129
    %132 = vmatprep.subr.mxu0 0.0
    %133 = vmatpush1.msra.mxu0 %v109
    %134 = vmatprep.subr.mxu0 0.0
    %135 = vmatpush1.msra.mxu0 %v110
    %136 = vmatprep.subr.mxu0 0.0
    %137 = vmatpush1.msra.mxu0 %v111
    %138 = vmatprep.subr.mxu0 0.0
    %139 = vmatpush1.msra.mxu0 %v112
    %140 = vmatprep.subr.mxu0 0.0
    %141 = vmatpush1.msra.mxu0 %v113
    %142 = vmatprep.subr.mxu0 0.0
    %143 = vmatpush1.msra.mxu0 %v114
    %144 = vmatprep.subr.mxu0 0.0
    %145 = vmatpush1.msra.mxu0 %v115
    %146 = vmatprep.subr.mxu0 0.0
    %147 = vmatpush1.msra.mxu0 %v116
    %148 = vmatprep.subr.mxu0 0.0
    %149 = vmatpush1.msra.mxu0 %v117
    %150 = vmatprep.subr.mxu0 0.0
    %151 = vmatpush1.msra.mxu0 %v118
    %152 = vmatprep.subr.mxu0 0.0
    %153 = vmatpush1.msra.mxu0 %v119
    %154 = vmatprep.subr.mxu0 0.0
    %155 = vmatpush1.msra.mxu0 %v120
    %156 = vmatprep.subr.mxu0 0.0
    %157 = vmatpush1.msra.mxu0 %v121
    %158 = vmatprep.subr.mxu0 0.0
    %159 = vmatpush1.msra.mxu0 %v122
    %160 = vmatprep.subr.mxu0 0.0
    %161 = vmatpush1.msra.mxu0 %v123
    %162 = vmatprep.subr.mxu0 0.0
    %163 = vmatpush1.msra.mxu0 %v124
    %164 = vmatprep.subr.mxu0 0.0
    %165 = vmatpush1.msra.mxu0 0.0
    %166 = vmatprep.subr.mxu0 0.0
    %167 = vmatpush1.msra.mxu0 0.0
    %168 = vmatprep.subr.mxu0 0.0
    %169 = vmatpush1.msra.mxu0 0.0
    %170 = vmatprep.subr.mxu0 0.0
    %171 = vmatpush1.msra.mxu0 0.0
    %172 = vmatprep.subr.mxu0 0.0
    %173 = vmatpush1.msra.mxu0 0.0
    %174 = vmatprep.subr.mxu0 0.0
    %175 = vmatpush1.msra.mxu0 0.0
    %176 = vmatprep.subr.mxu0 0.0
    %177 = vmatpush1.msra.mxu0 0.0
    %178 = vmatprep.subr.mxu0 0.0
    %179 = vmatpush1.msra.mxu0 0.0
    %180 = vmatprep.subr.mxu0 0.0
    %181 = vmatpush1.msra.mxu0 0.0
    %182 = vmatprep.subr.mxu0 0.0
    %183 = vmatpush1.msra.mxu0 0.0
    %184 = vmatprep.subr.mxu0 0.0
    %185 = vmatpush1.msra.mxu0 0.0
    %186 = vmatprep.subr.mxu0 0.0
    %187 = vmatpush1.msra.mxu0 0.0
    %188 = vmatprep.subr.mxu0 0.0
    %189 = vmatpush1.msra.mxu0 0.0
    %190 = vmatprep.subr.mxu0 0.0
    %191 = vmatpush1.msra.mxu0 0.0
    %192 = vmatprep.subr.mxu0 0.0
    %193 = vmatpush1.msra.mxu0 0.0
    %194 = vmatprep.subr.mxu0 0.0
    %195 = vmatpush1.msra.mxu0 0.0
    %196 = vmatprep.mubr.f32.mxu0 0.0
    %197 = vmatmul.mubr.f32.gmra.mrb[0].mxu0 %v107
    %v198 = vpop.f32.mrb[0].mxu0
    %v199 = vadd.f32 %v130, %v198
    %v200 = vpop.f32.mrb[0].mxu0
    %201 = vmatprep.mubr.f32.mxu0 0.0
    %202 = vmatmul.mubr.f32.gmra.mrb[0].mxu0 %v108
    %v203 = vpop.f32.mrb[0].mxu0
    %v204 = vadd.f32 %v130, %v203
    %v205 = vpop.f32.mrb[0].mxu0
    %206 = vdwg.mxu0
    %s207 = scalar_lea.vmem [#allocation2], 16
    %v208 = vld [vmem:[%s207] sm:$0xff]
    %v209 = vld [vmem:[%s207 + $0x8] sm:$0xff]
    %v210 = vld [vmem:[#allocation7] sm:$0xff]
    %v211 = vld [vmem:[#allocation7 + $0x8] sm:$0xff]
    %v212 = vld [vmem:[#allocation7 + $0x10] sm:$0xff]
    %v213 = vld [vmem:[#allocation7 + $0x18] sm:$0xff]
    %v214 = vld [vmem:[#allocation7 + $0x20] sm:$0xff]
    %v215 = vld [vmem:[#allocation7 + $0x28] sm:$0xff]
    %v216 = vld [vmem:[#allocation7 + $0x30] sm:$0xff]
    %v217 = vld [vmem:[#allocation7 + $0x38] sm:$0xff]
    %v218 = vld [vmem:[#allocation7 + $0x40] sm:$0xff]
    %v219 = vld [vmem:[#allocation7 + $0x48] sm:$0xff]
    %v220 = vld [vmem:[#allocation7 + $0x50] sm:$0xff]
    %v221 = vld [vmem:[#allocation7 + $0x58] sm:$0xff]
    %v222 = vld [vmem:[#allocation7 + $0x60] sm:$0xff]
    %v223 = vld [vmem:[#allocation7 + $0x68] sm:$0xff]
    %v224 = vld [vmem:[#allocation7 + $0x70] sm:$0xff]
    %v225 = vld [vmem:[#allocation7 + $0x78] sm:$0xff]
    %v226 = vld [vmem:[%s4] sm:$0x1]
    %v228 = vlaneseq
    %v229 = vshrl.u32 %v228, 7
    %v230 = vsub.s32 0, %v229
    %v231 = vrot.slane %v226, %v230
    %233 = vmatprep.subr.mxu0 0.0
    %234 = vmatpush1.msra.mxu0 %v210
    %235 = vmatprep.subr.mxu0 0.0
    %236 = vmatpush1.msra.mxu0 %v211
    %237 = vmatprep.subr.mxu0 0.0
    %238 = vmatpush1.msra.mxu0 %v212
    %239 = vmatprep.subr.mxu0 0.0
    %240 = vmatpush1.msra.mxu0 %v213
    %241 = vmatprep.subr.mxu0 0.0
    %242 = vmatpush1.msra.mxu0 %v214
    %243 = vmatprep.subr.mxu0 0.0
    %244 = vmatpush1.msra.mxu0 %v215
    %245 = vmatprep.subr.mxu0 0.0
    %246 = vmatpush1.msra.mxu0 %v216
    %247 = vmatprep.subr.mxu0 0.0
    %248 = vmatpush1.msra.mxu0 %v217
    %249 = vmatprep.subr.mxu0 0.0
    %250 = vmatpush1.msra.mxu0 %v218
    %251 = vmatprep.subr.mxu0 0.0
    %252 = vmatpush1.msra.mxu0 %v219
    %253 = vmatprep.subr.mxu0 0.0
    %254 = vmatpush1.msra.mxu0 %v220
    %255 = vmatprep.subr.mxu0 0.0
    %256 = vmatpush1.msra.mxu0 %v221
    %257 = vmatprep.subr.mxu0 0.0
    %258 = vmatpush1.msra.mxu0 %v222
    %259 = vmatprep.subr.mxu0 0.0
    %260 = vmatpush1.msra.mxu0 %v223
    %261 = vmatprep.subr.mxu0 0.0
    %262 = vmatpush1.msra.mxu0 %v224
    %263 = vmatprep.subr.mxu0 0.0
    %264 = vmatpush1.msra.mxu0 %v225
    %265 = vmatprep.subr.mxu0 0.0
    %266 = vmatpush1.msra.mxu0 0.0
    %267 = vmatprep.subr.mxu0 0.0
    %268 = vmatpush1.msra.mxu0 0.0
    %269 = vmatprep.subr.mxu0 0.0
    %270 = vmatpush1.msra.mxu0 0.0
    %271 = vmatprep.subr.mxu0 0.0
    %272 = vmatpush1.msra.mxu0 0.0
    %273 = vmatprep.subr.mxu0 0.0
    %274 = vmatpush1.msra.mxu0 0.0
    %275 = vmatprep.subr.mxu0 0.0
    %276 = vmatpush1.msra.mxu0 0.0
    %277 = vmatprep.subr.mxu0 0.0
    %278 = vmatpush1.msra.mxu0 0.0
    %279 = vmatprep.subr.mxu0 0.0
    %280 = vmatpush1.msra.mxu0 0.0
    %281 = vmatprep.subr.mxu0 0.0
    %282 = vmatpush1.msra.mxu0 0.0
    %283 = vmatprep.subr.mxu0 0.0
    %284 = vmatpush1.msra.mxu0 0.0
    %285 = vmatprep.subr.mxu0 0.0
    %286 = vmatpush1.msra.mxu0 0.0
    %287 = vmatprep.subr.mxu0 0.0
    %288 = vmatpush1.msra.mxu0 0.0
    %289 = vmatprep.subr.mxu0 0.0
    %290 = vmatpush1.msra.mxu0 0.0
    %291 = vmatprep.subr.mxu0 0.0
    %292 = vmatpush1.msra.mxu0 0.0
    %293 = vmatprep.subr.mxu0 0.0
    %294 = vmatpush1.msra.mxu0 0.0
    %295 = vmatprep.subr.mxu0 0.0
    %296 = vmatpush1.msra.mxu0 0.0
    %297 = vmatprep.mubr.f32.mxu0 0.0
    %298 = vmatmul.mubr.f32.gmra.mrb[0].mxu0 %v208
    %v299 = vpop.f32.mrb[0].mxu0
    %v300 = vadd.f32 %v231, %v299
    %v301 = vpop.f32.mrb[0].mxu0
    %302 = vmatprep.mubr.f32.mxu0 0.0
    %303 = vmatmul.mubr.f32.gmra.mrb[0].mxu0 %v209
    %v304 = vpop.f32.mrb[0].mxu0
    %v305 = vadd.f32 %v231, %v304
    %v306 = vpop.f32.mrb[0].mxu0
    %307 = vdwg.mxu0
    %v308 = vld [vmem:[#allocation8] sm:$0xff]
    %v309 = vld [vmem:[#allocation8 + $0x8] sm:$0xff]
    %v310 = vld [vmem:[#allocation8 + $0x10] sm:$0xff]
    %v311 = vld [vmem:[#allocation8 + $0x18] sm:$0xff]
    %v312 = vld [vmem:[#allocation8 + $0x20] sm:$0xff]
    %v313 = vld [vmem:[#allocation8 + $0x28] sm:$0xff]
    %v314 = vld [vmem:[#allocation8 + $0x30] sm:$0xff]
    %v315 = vld [vmem:[#allocation8 + $0x38] sm:$0xff]
    %v316 = vld [vmem:[#allocation8 + $0x40] sm:$0xff]
    %v317 = vld [vmem:[#allocation8 + $0x48] sm:$0xff]
    %v318 = vld [vmem:[#allocation8 + $0x50] sm:$0xff]
    %v319 = vld [vmem:[#allocation8 + $0x58] sm:$0xff]
    %v320 = vld [vmem:[#allocation10] sm:$0xff]
    %v321 = vld [vmem:[#allocation10 + $0x8] sm:$0xff]
    %v322 = vld [vmem:[#allocation10 + $0x10] sm:$0xff]
    %v323 = vld [vmem:[#allocation10 + $0x18] sm:$0xff]
    %v324 = vld [vmem:[#allocation10 + $0x20] sm:$0xff]
    %v325 = vld [vmem:[#allocation10 + $0x28] sm:$0xff]
    %v326 = vld [vmem:[#allocation10 + $0x30] sm:$0xff]
    %v327 = vld [vmem:[#allocation10 + $0x38] sm:$0xff]
    %v328 = vld [vmem:[#allocation10 + $0x40] sm:$0xff]
    %v329 = vld [vmem:[#allocation10 + $0x48] sm:$0xff]
    %v330 = vld [vmem:[#allocation10 + $0x50] sm:$0xff]
    %v331 = vld [vmem:[#allocation10 + $0x58] sm:$0xff]
    %v332 = vld [vmem:[#allocation10 + $0x60] sm:$0xff]
    %v333 = vld [vmem:[#allocation10 + $0x68] sm:$0xff]
    %v334 = vld [vmem:[#allocation10 + $0x70] sm:$0xff]
    %v335 = vld [vmem:[#allocation10 + $0x78] sm:$0xff]
    %v336 = vld [vmem:[#allocation10 + $0x80] sm:$0xff]
    %v337 = vld [vmem:[#allocation10 + $0x88] sm:$0xff]
    %v338 = vld [vmem:[#allocation10 + $0x90] sm:$0xff]
    %v339 = vld [vmem:[#allocation10 + $0x98] sm:$0xff]
    %v340 = vld [vmem:[#allocation10 + $0xa0] sm:$0xff]
    %v341 = vld [vmem:[#allocation10 + $0xa8] sm:$0xff]
    %v342 = vld [vmem:[#allocation10 + $0xb0] sm:$0xff]
    %v343 = vld [vmem:[#allocation10 + $0xb8] sm:$0xff]
    %v344 = vld [vmem:[#allocation10 + $0xc0] sm:$0xff]
    %v345 = vld [vmem:[#allocation10 + $0xc8] sm:$0xff]
    %v346 = vld [vmem:[#allocation10 + $0xd0] sm:$0xff]
    %v347 = vld [vmem:[#allocation10 + $0xd8] sm:$0xff]
    %v348 = vld [vmem:[#allocation10 + $0xe0] sm:$0xff]
    %v349 = vld [vmem:[#allocation10 + $0xe8] sm:$0xff]
    %v350 = vld [vmem:[#allocation10 + $0xf0] sm:$0xff]
    %v351 = vld [vmem:[#allocation10 + $0xf8] sm:$0xff]
    %v352 = vld [vmem:[#allocation10 + $0x100] sm:$0xff]
    %v353 = vld [vmem:[#allocation10 + $0x108] sm:$0xff]
    %v354 = vld [vmem:[#allocation10 + $0x110] sm:$0xff]
    %v355 = vld [vmem:[#allocation10 + $0x118] sm:$0xff]
    %v356 = vld [vmem:[#allocation10 + $0x120] sm:$0xff]
    %v357 = vld [vmem:[#allocation10 + $0x128] sm:$0xff]
    %v358 = vld [vmem:[#allocation10 + $0x130] sm:$0xff]
    %v359 = vld [vmem:[#allocation10 + $0x138] sm:$0xff]
    %v360 = vld [vmem:[#allocation10 + $0x140] sm:$0xff]
    %v361 = vld [vmem:[#allocation10 + $0x148] sm:$0xff]
    %v362 = vld [vmem:[#allocation10 + $0x150] sm:$0xff]
    %v363 = vld [vmem:[#allocation10 + $0x158] sm:$0xff]
    %v364 = vld [vmem:[#allocation10 + $0x160] sm:$0xff]
    %v365 = vld [vmem:[#allocation10 + $0x168] sm:$0xff]
    %v366 = vld [vmem:[#allocation10 + $0x170] sm:$0xff]
    %v367 = vld [vmem:[#allocation10 + $0x178] sm:$0xff]
    %v368 = vld [vmem:[#allocation10 + $0x180] sm:$0xff]
    %v369 = vld [vmem:[#allocation10 + $0x188] sm:$0xff]
    %v370 = vld [vmem:[#allocation10 + $0x190] sm:$0xff]
    %v371 = vld [vmem:[#allocation10 + $0x198] sm:$0xff]
    %v372 = vld [vmem:[#allocation10 + $0x1a0] sm:$0xff]
    %v373 = vld [vmem:[#allocation10 + $0x1a8] sm:$0xff]
    %v374 = vld [vmem:[#allocation10 + $0x1b0] sm:$0xff]
    %v375 = vld [vmem:[#allocation10 + $0x1b8] sm:$0xff]
    %v376 = vld [vmem:[#allocation10 + $0x1c0] sm:$0xff]
    %v377 = vld [vmem:[#allocation10 + $0x1c8] sm:$0xff]
    %v378 = vld [vmem:[#allocation10 + $0x1d0] sm:$0xff]
    %v379 = vld [vmem:[#allocation10 + $0x1d8] sm:$0xff]
    %v380 = vld [vmem:[#allocation10 + $0x1e0] sm:$0xff]
    %v381 = vld [vmem:[#allocation10 + $0x1e8] sm:$0xff]
    %v382 = vld [vmem:[#allocation10 + $0x1f0] sm:$0xff]
    %v383 = vld [vmem:[#allocation10 + $0x1f8] sm:$0xff]
    %v384 = vld [vmem:[#allocation10 + $0x200] sm:$0xff]
    %v385 = vld [vmem:[#allocation10 + $0x208] sm:$0xff]
    %v386 = vld [vmem:[#allocation10 + $0x210] sm:$0xff]
    %v387 = vld [vmem:[#allocation10 + $0x218] sm:$0xff]
    %v388 = vld [vmem:[#allocation10 + $0x220] sm:$0xff]
    %v389 = vld [vmem:[#allocation10 + $0x228] sm:$0xff]
    %v390 = vld [vmem:[#allocation10 + $0x230] sm:$0xff]
    %v391 = vld [vmem:[#allocation10 + $0x238] sm:$0xff]
    %v392 = vld [vmem:[#allocation10 + $0x240] sm:$0xff]
    %v393 = vld [vmem:[#allocation10 + $0x248] sm:$0xff]
    %v394 = vld [vmem:[#allocation10 + $0x250] sm:$0xff]
    %v395 = vld [vmem:[#allocation10 + $0x258] sm:$0xff]
    %v396 = vld [vmem:[#allocation10 + $0x260] sm:$0xff]
    %v397 = vld [vmem:[#allocation10 + $0x268] sm:$0xff]
    %v398 = vld [vmem:[#allocation10 + $0x270] sm:$0xff]
    %v399 = vld [vmem:[#allocation10 + $0x278] sm:$0xff]
    %v400 = vld [vmem:[#allocation10 + $0x280] sm:$0xff]
    %v401 = vld [vmem:[#allocation10 + $0x288] sm:$0xff]
    %v402 = vld [vmem:[#allocation10 + $0x290] sm:$0xff]
    %v403 = vld [vmem:[#allocation10 + $0x298] sm:$0xff]
    %v404 = vld [vmem:[#allocation10 + $0x2a0] sm:$0xff]
    %v405 = vld [vmem:[#allocation10 + $0x2a8] sm:$0xff]
    %v406 = vld [vmem:[#allocation10 + $0x2b0] sm:$0xff]
    %v407 = vld [vmem:[#allocation10 + $0x2b8] sm:$0xff]
    %v408 = vld [vmem:[#allocation10 + $0x2c0] sm:$0xff]
    %v409 = vld [vmem:[#allocation10 + $0x2c8] sm:$0xff]
    %v410 = vld [vmem:[#allocation10 + $0x2d0] sm:$0xff]
    %v411 = vld [vmem:[#allocation10 + $0x2d8] sm:$0xff]
    %v412 = vld [vmem:[#allocation10 + $0x2e0] sm:$0xff]
    %v413 = vld [vmem:[#allocation10 + $0x2e8] sm:$0xff]
    %v414 = vld [vmem:[#allocation10 + $0x2f0] sm:$0xff]
    %v415 = vld [vmem:[#allocation10 + $0x2f8] sm:$0xff]
    %v416 = vld [vmem:[%s7] sm:$0x1]
    %v418 = vlaneseq
    %v419 = vshrl.u32 %v418, 7
    %v420 = vsub.s32 0, %v419
    %v421 = vrot.slane %v416, %v420
    %423 = vmatprep.subr.mxu0 0.0
    %424 = vmatpush1.msra.mxu0 %v320
    %425 = vmatprep.subr.mxu0 0.0
    %426 = vmatpush1.msra.mxu0 %v321
    %427 = vmatprep.subr.mxu0 0.0
    %428 = vmatpush1.msra.mxu0 %v322
    %429 = vmatprep.subr.mxu0 0.0
    %430 = vmatpush1.msra.mxu0 %v323
    %431 = vmatprep.subr.mxu0 0.0
    %432 = vmatpush1.msra.mxu0 %v324
    %433 = vmatprep.subr.mxu0 0.0
    %434 = vmatpush1.msra.mxu0 %v325
    %435 = vmatprep.subr.mxu0 0.0
    %436 = vmatpush1.msra.mxu0 %v326
    %437 = vmatprep.subr.mxu0 0.0
    %438 = vmatpush1.msra.mxu0 %v327
    %439 = vmatprep.subr.mxu0 0.0
    %440 = vmatpush1.msra.mxu0 %v328
    %441 = vmatprep.subr.mxu0 0.0
    %442 = vmatpush1.msra.mxu0 %v329
    %443 = vmatprep.subr.mxu0 0.0
    %444 = vmatpush1.msra.mxu0 %v330
    %445 = vmatprep.subr.mxu0 0.0
    %446 = vmatpush1.msra.mxu0 %v331
    %447 = vmatprep.subr.mxu0 0.0
    %448 = vmatpush1.msra.mxu0 %v332
    %449 = vmatprep.subr.mxu0 0.0
    %450 = vmatpush1.msra.mxu0 %v333
    %451 = vmatprep.subr.mxu0 0.0
    %452 = vmatpush1.msra.mxu0 %v334
    %453 = vmatprep.subr.mxu0 0.0
    %454 = vmatpush1.msra.mxu0 %v335
    %455 = vmatprep.subr.mxu0 0.0
    %456 = vmatpush1.msra.mxu0 %v336
    %457 = vmatprep.subr.mxu0 0.0
    %458 = vmatpush1.msra.mxu0 %v337
    %459 = vmatprep.subr.mxu0 0.0
    %460 = vmatpush1.msra.mxu0 %v338
    %461 = vmatprep.subr.mxu0 0.0
    %462 = vmatpush1.msra.mxu0 %v339
    %463 = vmatprep.subr.mxu0 0.0
    %464 = vmatpush1.msra.mxu0 %v340
    %465 = vmatprep.subr.mxu0 0.0
    %466 = vmatpush1.msra.mxu0 %v341
    %467 = vmatprep.subr.mxu0 0.0
    %468 = vmatpush1.msra.mxu0 %v342
    %469 = vmatprep.subr.mxu0 0.0
    %470 = vmatpush1.msra.mxu0 %v343
    %471 = vmatprep.subr.mxu0 0.0
    %472 = vmatpush1.msra.mxu0 %v344
    %473 = vmatprep.subr.mxu0 0.0
    %474 = vmatpush1.msra.mxu0 %v345
    %475 = vmatprep.subr.mxu0 0.0
    %476 = vmatpush1.msra.mxu0 %v346
    %477 = vmatprep.subr.mxu0 0.0
    %478 = vmatpush1.msra.mxu0 %v347
    %479 = vmatprep.subr.mxu0 0.0
    %480 = vmatpush1.msra.mxu0 %v348
    %481 = vmatprep.subr.mxu0 0.0
    %482 = vmatpush1.msra.mxu0 %v349
    %483 = vmatprep.subr.mxu0 0.0
    %484 = vmatpush1.msra.mxu0 %v350
    %485 = vmatprep.subr.mxu0 0.0
    %486 = vmatpush1.msra.mxu0 %v351
    %487 = vmatprep.mubr.f32.mxu0 %v309
    %488 = vmatmul.mubr.f32.gmra.mrb[0].mxu0 %v308
    %v489 = vpop.f32.mrb[0].mxu0
    %v490 = vadd.f32 %v421, %v489
    %v491 = vpop.f32.mrb[0].mxu0
    %492 = vmatprep.mubr.f32.mxu0 %v315
    %493 = vmatmul.mubr.f32.gmra.mrb[0].mxu0 %v314
    %v494 = vpop.f32.mrb[0].mxu0
    %v495 = vadd.f32 %v421, %v494
    %v496 = vpop.f32.mrb[0].mxu0
    %497 = vdwg.mxu0
    %498 = vmatprep.subr.mxu0 0.0
    %499 = vmatpush1.msra.mxu0 %v352
    %500 = vmatprep.subr.mxu0 0.0
    %501 = vmatpush1.msra.mxu0 %v353
    %502 = vmatprep.subr.mxu0 0.0
    %503 = vmatpush1.msra.mxu0 %v354
    %504 = vmatprep.subr.mxu0 0.0
    %505 = vmatpush1.msra.mxu0 %v355
    %506 = vmatprep.subr.mxu0 0.0
    %507 = vmatpush1.msra.mxu0 %v356
    %508 = vmatprep.subr.mxu0 0.0
    %509 = vmatpush1.msra.mxu0 %v357
    %510 = vmatprep.subr.mxu0 0.0
    %511 = vmatpush1.msra.mxu0 %v358
    %512 = vmatprep.subr.mxu0 0.0
    %513 = vmatpush1.msra.mxu0 %v359
    %514 = vmatprep.subr.mxu0 0.0
    %515 = vmatpush1.msra.mxu0 %v360
    %516 = vmatprep.subr.mxu0 0.0
    %517 = vmatpush1.msra.mxu0 %v361
    %518 = vmatprep.subr.mxu0 0.0
    %519 = vmatpush1.msra.mxu0 %v362
    %520 = vmatprep.subr.mxu0 0.0
    %521 = vmatpush1.msra.mxu0 %v363
    %522 = vmatprep.subr.mxu0 0.0
    %523 = vmatpush1.msra.mxu0 %v364
    %524 = vmatprep.subr.mxu0 0.0
    %525 = vmatpush1.msra.mxu0 %v365
    %526 = vmatprep.subr.mxu0 0.0
    %527 = vmatpush1.msra.mxu0 %v366
    %528 = vmatprep.subr.mxu0 0.0
    %529 = vmatpush1.msra.mxu0 %v367
    %530 = vmatprep.subr.mxu0 0.0
    %531 = vmatpush1.msra.mxu0 %v368
    %532 = vmatprep.subr.mxu0 0.0
    %533 = vmatpush1.msra.mxu0 %v369
    %534 = vmatprep.subr.mxu0 0.0
    %535 = vmatpush1.msra.mxu0 %v370
    %536 = vmatprep.subr.mxu0 0.0
    %537 = vmatpush1.msra.mxu0 %v371
    %538 = vmatprep.subr.mxu0 0.0
    %539 = vmatpush1.msra.mxu0 %v372
    %540 = vmatprep.subr.mxu0 0.0
    %541 = vmatpush1.msra.mxu0 %v373
    %542 = vmatprep.subr.mxu0 0.0
    %543 = vmatpush1.msra.mxu0 %v374
    %544 = vmatprep.subr.mxu0 0.0
    %545 = vmatpush1.msra.mxu0 %v375
    %546 = vmatprep.subr.mxu0 0.0
    %547 = vmatpush1.msra.mxu0 %v376
    %548 = vmatprep.subr.mxu0 0.0
    %549 = vmatpush1.msra.mxu0 %v377
    %550 = vmatprep.subr.mxu0 0.0
    %551 = vmatpush1.msra.mxu0 %v378
    %552 = vmatprep.subr.mxu0 0.0
    %553 = vmatpush1.msra.mxu0 %v379
    %554 = vmatprep.subr.mxu0 0.0
    %555 = vmatpush1.msra.mxu0 %v380
    %556 = vmatprep.subr.mxu0 0.0
    %557 = vmatpush1.msra.mxu0 %v381
    %558 = vmatprep.subr.mxu0 0.0
    %559 = vmatpush1.msra.mxu0 %v382
    %560 = vmatprep.subr.mxu0 0.0
    %561 = vmatpush1.msra.mxu0 %v383
    %562 = vmatprep.mubr.f32.mxu0 %v311
    %563 = vmatmul.mubr.f32.gmra.mrb[0].mxu0 %v310
    %v564 = vpop.f32.mrb[0].mxu0
    %v565 = vadd.f32 %v490, %v564
    %v566 = vpop.f32.mrb[0].mxu0
    %567 = vmatprep.mubr.f32.mxu0 %v317
    %568 = vmatmul.mubr.f32.gmra.mrb[0].mxu0 %v316
    %v569 = vpop.f32.mrb[0].mxu0
    %v570 = vadd.f32 %v495, %v569
    %v571 = vpop.f32.mrb[0].mxu0
    %572 = vdwg.mxu0
    %573 = vmatprep.subr.mxu0 0.0
    %574 = vmatpush1.msra.mxu0 %v384
    %575 = vmatprep.subr.mxu0 0.0
    %576 = vmatpush1.msra.mxu0 %v385
    %577 = vmatprep.subr.mxu0 0.0
    %578 = vmatpush1.msra.mxu0 %v386
    %579 = vmatprep.subr.mxu0 0.0
    %580 = vmatpush1.msra.mxu0 %v387
    %581 = vmatprep.subr.mxu0 0.0
    %582 = vmatpush1.msra.mxu0 %v388
    %583 = vmatprep.subr.mxu0 0.0
    %584 = vmatpush1.msra.mxu0 %v389
    %585 = vmatprep.subr.mxu0 0.0
    %586 = vmatpush1.msra.mxu0 %v390
    %587 = vmatprep.subr.mxu0 0.0
    %588 = vmatpush1.msra.mxu0 %v391
    %589 = vmatprep.subr.mxu0 0.0
    %590 = vmatpush1.msra.mxu0 %v392
    %591 = vmatprep.subr.mxu0 0.0
    %592 = vmatpush1.msra.mxu0 %v393
    %593 = vmatprep.subr.mxu0 0.0
    %594 = vmatpush1.msra.mxu0 %v394
    %595 = vmatprep.subr.mxu0 0.0
    %596 = vmatpush1.msra.mxu0 %v395
    %597 = vmatprep.subr.mxu0 0.0
    %598 = vmatpush1.msra.mxu0 %v396
    %599 = vmatprep.subr.mxu0 0.0
    %600 = vmatpush1.msra.mxu0 %v397
    %601 = vmatprep.subr.mxu0 0.0
    %602 = vmatpush1.msra.mxu0 %v398
    %603 = vmatprep.subr.mxu0 0.0
    %604 = vmatpush1.msra.mxu0 %v399
    %605 = vmatprep.subr.mxu0 0.0
    %606 = vmatpush1.msra.mxu0 %v400
    %607 = vmatprep.subr.mxu0 0.0
    %608 = vmatpush1.msra.mxu0 %v401
    %609 = vmatprep.subr.mxu0 0.0
    %610 = vmatpush1.msra.mxu0 %v402
    %611 = vmatprep.subr.mxu0 0.0
    %612 = vmatpush1.msra.mxu0 %v403
    %613 = vmatprep.subr.mxu0 0.0
    %614 = vmatpush1.msra.mxu0 %v404
    %615 = vmatprep.subr.mxu0 0.0
    %616 = vmatpush1.msra.mxu0 %v405
    %617 = vmatprep.subr.mxu0 0.0
    %618 = vmatpush1.msra.mxu0 %v406
    %619 = vmatprep.subr.mxu0 0.0
    %620 = vmatpush1.msra.mxu0 %v407
    %621 = vmatprep.subr.mxu0 0.0
    %622 = vmatpush1.msra.mxu0 %v408
    %623 = vmatprep.subr.mxu0 0.0
    %624 = vmatpush1.msra.mxu0 %v409
    %625 = vmatprep.subr.mxu0 0.0
    %626 = vmatpush1.msra.mxu0 %v410
    %627 = vmatprep.subr.mxu0 0.0
    %628 = vmatpush1.msra.mxu0 %v411
    %629 = vmatprep.subr.mxu0 0.0
    %630 = vmatpush1.msra.mxu0 %v412
    %631 = vmatprep.subr.mxu0 0.0
    %632 = vmatpush1.msra.mxu0 %v413
    %633 = vmatprep.subr.mxu0 0.0
    %634 = vmatpush1.msra.mxu0 %v414
    %635 = vmatprep.subr.mxu0 0.0
    %636 = vmatpush1.msra.mxu0 %v415
    %637 = vmatprep.mubr.f32.mxu0 %v313
    %638 = vmatmul.mubr.f32.gmra.mrb[0].mxu0 %v312
    %v639 = vpop.f32.mrb[0].mxu0
    %v640 = vadd.f32 %v565, %v639
    %v641 = vpop.f32.mrb[0].mxu0
    %642 = vmatprep.mubr.f32.mxu0 %v319
    %643 = vmatmul.mubr.f32.gmra.mrb[0].mxu0 %v318
    %v644 = vpop.f32.mrb[0].mxu0
    %v645 = vadd.f32 %v570, %v644
    %v646 = vpop.f32.mrb[0].mxu0
    %647 = vdwg.mxu0
    %648 = vst [vmem:[#allocation15] sm:$0xff] %v640
    %649 = vst [vmem:[#allocation15 + $0x8] sm:$0xff] %v645
    %v650 = vadd.f32 %v199, %v300
    %v651 = vadd.f32 %v204, %v305
    %v652 = vmul.f32 %v650, 0.5
    %v653 = vmul.f32 %v651, 0.5
    %v654 = vld [vmem:[%s8] sm:$0xff]
    %v655 = vld [vmem:[%s8 + $0x8] sm:$0xff]
    %vm656 = vcmp.gt.f32.partialorder %v654, 0.0
    %vm657 = vcmp.gt.f32.partialorder %v655, 0.0
    %v658 = vmax.f32 %v654, 1e-30
    %v659 = vmax.f32 %v655, 1e-30
    %v660 = vlog2.pop %v658
    %v661 = vmul.f32 %v660, 0.6931472
    %v662 = vlog2.pop %v659
    %v663 = vmul.f32 %v662, 0.6931472
    %v664 = vmul.f32 %v661, 2.8
    %v665 = vmul.f32 %v663, 2.8
    %v666 = vmul.f32 %v664, 1.442695
    %v667 = vpow.pop %v666
    %v668 = vmul.f32 %v665, 1.442695
    %v669 = vpow.pop %v668
    %v670 = vsel %vm656, %v667, 0.0
    %v671 = vsel %vm657, %v669, 0.0
    %v672 = vxor.u32 %v652, 2147483648
    %v673 = vxor.u32 %v653, 2147483648
    %v674 = vmul.f32 %v672, 1.442695
    %v675 = vpow.pop %v674
    %v676 = vmul.f32 %v673, 1.442695
    %v677 = vpow.pop %v676
    %v678 = vadd.f32 %v675, 1.0
    %v679 = vadd.f32 %v677, 1.0
    %v680 = vrcp.pop %v678
    %v681 = vmul.f32 1.0, %v680
    %v682 = vrcp.pop %v679
    %v683 = vmul.f32 1.0, %v682
    %v684 = vmul.f32 %v681, %v670
    %v685 = vmul.f32 %v683, %v671
    %686 = vst [vmem:[#allocation11] sm:$0xff] %v684
    %687 = vst [vmem:[#allocation11 + $0x8] sm:$0xff] %v685
    %v688 = vpack.c.bf16 %v204, %v199
    %v690 = vunpack.c.l.b16 %v688
    %v691 = vunpack.c.h.b16 %v688
    %v692 = vpack.c.b16 %v690, %v690
    %v693 = vpack.c.b16 %v691, %v691
    %696 = vst [vmem:[#allocation12] sm:$0xf] %v692
    %697 = vst [vmem:[#allocation12 + $0x4] sm:$0xf] %v693
    %v698 = vpack.c.bf16 %v305, %v300
    %v700 = vunpack.c.l.b16 %v698
    %v701 = vunpack.c.h.b16 %v698
    %v702 = vpack.c.b16 %v700, %v700
    %v703 = vpack.c.b16 %v701, %v701
    %706 = vst [vmem:[#allocation14] sm:$0xf] %v702
    %707 = vst [vmem:[#allocation14 + $0x4] sm:$0xf] %v703
    // Predicated region
    $region58: #{tpu_custom_call.1} parent=1 // pred_check
      _
    $region59: #{tpu_custom_call.1} parent=1 // pred_check_branch
      %709 = sbr.rel (0) target = $region61
    $region60: #{tpu_custom_call.1} parent=1 // pred_region
      %s711 = ssub.s32 256, 256
      %712 = vsyncadd [#allocation4], %s711
      %s713 = sshll.u32 [#allocation11], 4
      %s714 = int_to_ptr.vmem [resolvable:$true] %s713
      %719 = dma.vmem_to_hbm [thread:$0]  %s714, 256, %s9, [#allocation4], 128, 128, 8
    $region61: #{tpu_custom_call.1} parent=1 // pred_fallthru
      _
    // Predicated region
    $region62: #{tpu_custom_call.1} parent=1 // pred_check
      _
    $region63: #{tpu_custom_call.1} parent=1 // pred_check_branch
      %721 = sbr.rel (0) target = $region65
    $region64: #{tpu_custom_call.1} parent=1 // pred_region
      %s723 = ssub.s32 128, 128
      %724 = vsyncadd [#allocation13], %s723
      %s725 = sshll.u32 [#allocation12], 4
      %s726 = int_to_ptr.vmem [resolvable:$true] %s725
      %731 = dma.vmem_to_hbm [thread:$0]  %s726, 128, %s10, [#allocation13], 64, 64, 4
    $region65: #{tpu_custom_call.1} parent=1 // pred_fallthru
      _
    // Predicated region
    $region66: #{tpu_custom_call.1} parent=1 // pred_check
      _
    $region67: #{tpu_custom_call.1} parent=1 // pred_check_branch
      %733 = sbr.rel (0) target = $region69
    $region68: #{tpu_custom_call.1} parent=1 // pred_region
      %s735 = ssub.s32 128, 128
      %736 = vsyncadd [#allocation13], %s735
      %s737 = sshll.u32 [#allocation14], 4
      %s738 = int_to_ptr.vmem [resolvable:$true] %s737
      %743 = dma.vmem_to_hbm [thread:$0]  %s738, 128, %s11, [#allocation13], 64, 64, 4
    $region69: #{tpu_custom_call.1} parent=1 // pred_fallthru
      _
    // Predicated region
    $region70: #{tpu_custom_call.1} parent=1 // pred_check
      _
    $region71: #{tpu_custom_call.1} parent=1 // pred_check_branch
      %745 = sbr.rel (0) target = $region73
    $region72: #{tpu_custom_call.1} parent=1 // pred_region
      %s747 = ssub.s32 256, 256
      %748 = vsyncadd [#allocation16], %s747
      %s749 = sshll.u32 [#allocation15], 4
      %s750 = int_to_ptr.vmem [resolvable:$true] %s749
      %755 = dma.vmem_to_hbm [thread:$0]  %s750, 256, %s12, [#allocation16], 128, 128, 8
    $region73: #{tpu_custom_call.1} parent=1 // pred_fallthru
      _
    // Predicated region
    $region74: #{tpu_custom_call.1} parent=1 // pred_check
      _
    $region75: #{tpu_custom_call.1} parent=1 // pred_check_branch
      %757 = sbr.rel (0) target = $region77
    $region76: #{tpu_custom_call.1} parent=1 // pred_region
      %758 = dma.done [#allocation4], 256
    $region77: #{tpu_custom_call.1} parent=1 // pred_fallthru
      _
    // Predicated region
    $region78: #{tpu_custom_call.1} parent=1 // pred_check
      _
    $region79: #{tpu_custom_call.1} parent=1 // pred_check_branch
      %760 = sbr.rel (0) target = $region81
    $region80: #{tpu_custom_call.1} parent=1 // pred_region
      %761 = dma.done [#allocation13], 128
    $region81: #{tpu_custom_call.1} parent=1 // pred_fallthru
      _
    // Predicated region
    $region82: #{tpu_custom_call.1} parent=1 // pred_check
      _
    $region83: #{tpu_custom_call.1} parent=1 // pred_check_branch
      %763 = sbr.rel (0) target = $region85
    $region84: #{tpu_custom_call.1} parent=1 // pred_region
      %764 = dma.done [#allocation13], 128
    $region85: #{tpu_custom_call.1} parent=1 // pred_fallthru
      _
    // Predicated region
    $region86: #{tpu_custom_call.1} parent=1 // pred_check
      _
    $region87: #{tpu_custom_call.1} parent=1 // pred_check_branch
      %766 = sbr.rel (0) target = $region89
    $region88: #{tpu_custom_call.1} parent=1 // pred_region
      %767 = dma.done [#allocation16], 256
    $region89: #{tpu_custom_call.1} parent=1 // pred_fallthru
      _
    %768 = vsyncpa [#allocation3], 1
    %769 = vsyncpa [#allocation6], 1
    %770 = vsyncpa [#allocation9], 1
    %771 = vsyncpa [#allocation4], 1
    %772 = vsyncpa [#allocation13], 1
    %773 = vsyncpa [#allocation16], 1

</llo_original>
